<compile_context>
chip_gen: v7x
topology: tpu7x:2x2x1
jax: 0.10.0
libtpu: 0.0.40
codegen_flags: <defaults>
</compile_context>

<pallas_src>
import jax
import jax.numpy as jnp
from jax.experimental import pallas as pl
from jax.experimental.pallas import tpu as pltpu

BN_EPS = 1e-5


def _mlp_kernel(x_ref,
                w1, g1, be1,
                w2, g2, be2,
                w3, g3, be3,
                w4, g4, be4,
                w5, b5,
                o_ref):
    """Whole forward pass in one kernel: everything fits comfortably in VMEM."""

    def lin_bn_relu(h, w_ref, g_ref, be_ref):
        # Linear (no bias: a pre-BN bias is exactly cancelled by mean subtraction).
        y = jnp.dot(h.astype(w_ref.dtype), w_ref[...],
                    preferred_element_type=jnp.float32)
        # One-pass training-mode batch statistics (biased variance).
        m = jnp.mean(y, axis=0, keepdims=True)
        m2 = jnp.mean(y * y, axis=0, keepdims=True)
        var = m2 - m * m
        # Fold BN normalize + affine into a single per-feature scale / shift.
        scale = g_ref[...] * jax.lax.rsqrt(var + BN_EPS)
        shift = be_ref[...] - m * scale
        # ReLU
        return jnp.maximum(y * scale + shift, 0.0)

    h = x_ref[...]
    h = lin_bn_relu(h, w1, g1, be1)
    h = lin_bn_relu(h, w2, g2, be2)
    h = lin_bn_relu(h, w3, g3, be3)
    h = lin_bn_relu(h, w4, g4, be4)
    # Final linear + sigmoid (exp + approximate reciprocal both on the EUP slot).
    z = jnp.dot(h.astype(w5.dtype), w5[...],
                preferred_element_type=jnp.float32) + b5[...]
    o_ref[...] = pl.reciprocal(1.0 + jnp.exp(-z), approx=True).astype(o_ref.dtype)


def model_linear_forward(x, params, matmul_dtype=jnp.bfloat16):
    """params: full torch-style flat list
         [w1,b1,g1,be1, w2,b2,g2,be2, w3,b3,g3,be3, w4,b4,g4,be4, w5,b5]
       with linear weights already transposed to (in, out) and all vectors
       shaped (1, out).  Biases b1..b4 are dropped before the kernel call
       because training-mode BatchNorm cancels them exactly."""
    (w1, _b1, g1, be1,
     w2, _b2, g2, be2,
     w3, _b3, g3, be3,
     w4, _b4, g4, be4,
     w5, b5) = params

    cast = lambda w: w.astype(matmul_dtype)
    kernel_args = (x.astype(matmul_dtype),
                   cast(w1), g1, be1,
                   cast(w2), g2, be2,
                   cast(w3), g3, be3,
                   cast(w4), g4, be4,
                   cast(w5), b5)

    B = x.shape[0]
    num_classes = w5.shape[-1]

    flops = 2 * B * sum(int(w.shape[0]) * int(w.shape[1])
                        for w in (w1, w2, w3, w4, w5))
    bytes_accessed = (sum(int(a.size) * a.dtype.itemsize for a in kernel_args)
                      + B * num_classes * 4)
    cost = pl.CostEstimate(flops=flops,
                           transcendentals=2 * B * num_classes + 4 * 128,
                           bytes_accessed=bytes_accessed)

    vmem_spec = pl.BlockSpec(memory_space=pltpu.MemorySpace.VMEM)

    # TODO(synk): for large B on v7x (2 TensorCores / 64 MiB VMEM) add a
    # parallel batch grid with a two-pass BN (per-tile sum / sum-of-squares
    # accumulation); the single-shot whole-batch-resident path below is the
    # right choice for small batches and for single-TC v5e/v6e.
    return pl.pallas_call(
        _mlp_kernel,
        out_shape=jax.ShapeDtypeStruct((B, num_classes), jnp.float32),
        in_specs=[vmem_spec] * len(kernel_args),
        out_specs=vmem_spec,
        compiler_params=pltpu.CompilerParams(vmem_limit_bytes=32 * 1024 * 1024),
        cost_estimate=cost,
    )(*kernel_args)


def init_params(key, dim_in=128, num_classes=2):
    """Deterministic parameter init mimicking the torch module's shapes.
    Linear weights uniform(-1/sqrt(fan_in), 1/sqrt(fan_in)); BN gamma=1, beta=0.
    All parameters (including the pre-BN biases b1..b4, which only the pure-JAX
    reference uses) are returned so the reference matches PyTorch semantics."""
    dims = [dim_in, 64, 32, 16, 8, num_classes]
    params = []
    for i in range(5):
        fan_in, fan_out = dims[i], dims[i + 1]
        key, kw, kb = jax.random.split(key, 3)
        bound = 1.0 / jnp.sqrt(fan_in)
        # torch stores (out, in); we pre-transpose to (in, out) for the kernel.
        w = jax.random.uniform(kw, (fan_in, fan_out), jnp.float32, -bound, bound)
        b = jax.random.uniform(kb, (1, fan_out), jnp.float32, -bound, bound)
        params.append(w)
        params.append(b)
        if i < 4:  # BN after the first four linears
            params.append(jnp.ones((1, fan_out), jnp.float32))   # gamma
            params.append(jnp.zeros((1, fan_out), jnp.float32))  # beta
    return params


def reference_forward(x, params):
    """Pure-JAX (f32) reference with exact PyTorch forward semantics:
    biased Linear, training-mode BN (two-pass stats), exact sigmoid."""
    (w1, b1, g1, be1,
     w2, b2, g2, be2,
     w3, b3, g3, be3,
     w4, b4, g4, be4,
     w5, b5) = params

    def lin_bn_relu(h, w, b, g, be):
        y = h @ w + b
        mean = jnp.mean(y, axis=0, keepdims=True)
        var = jnp.mean((y - mean) ** 2, axis=0, keepdims=True)
        return jnp.maximum((y - mean) / jnp.sqrt(var + BN_EPS) * g + be, 0.0)

    h = lin_bn_relu(x, w1, b1, g1, be1)
    h = lin_bn_relu(h, w2, b2, g2, be2)
    h = lin_bn_relu(h, w3, b3, g3, be3)
    h = lin_bn_relu(h, w4, b4, g4, be4)
    return jax.nn.sigmoid(h @ w5 + b5)


if __name__ == "__main__":
    key = jax.random.PRNGKey(0)
    k_param, k_x = jax.random.split(key)

    B, DIM_IN, NUM_CLASSES = 8, 128, 2
    params = init_params(k_param, DIM_IN, NUM_CLASSES)
    x = jax.random.normal(k_x, (B, DIM_IN), jnp.float32)

    ref = reference_forward(x, params)

    # f32-matmul path: only deltas vs the reference are the dropped (BN-cancelled)
    # biases, one-pass variance, folded BN, and the approximate sigmoid reciprocal.
    out_f32 = jax.block_until_ready(model_linear_forward(x, params, jnp.float32))
    assert out_f32.shape == (B, NUM_CLASSES)
    assert jnp.allclose(out_f32, ref, atol=2e-3, rtol=2e-3), "f32 path mismatch"

    # bf16-matmul path (default): MXU-native inputs, f32 accumulation.
    out_bf16 = jax.block_until_ready(model_linear_forward(x, params))
    assert out_bf16.shape == (B, NUM_CLASSES)
    assert jnp.allclose(out_bf16, ref, atol=5e-2, rtol=5e-2), "bf16 path mismatch"

    print("KERNEL_OK")
</pallas_src>

<mosaic_0001>
module attributes {stable_mosaic.version = 11 : i64} {
  func.func @_mlp_kernel(%arg0: memref<8x128xf32, #tpu.memory_space<vmem>>, %arg1: memref<128x64xf32, #tpu.memory_space<vmem>>, %arg2: memref<1x64xf32, #tpu.memory_space<vmem>>, %arg3: memref<1x64xf32, #tpu.memory_space<vmem>>, %arg4: memref<64x32xf32, #tpu.memory_space<vmem>>, %arg5: memref<1x32xf32, #tpu.memory_space<vmem>>, %arg6: memref<1x32xf32, #tpu.memory_space<vmem>>, %arg7: memref<32x16xf32, #tpu.memory_space<vmem>>, %arg8: memref<1x16xf32, #tpu.memory_space<vmem>>, %arg9: memref<1x16xf32, #tpu.memory_space<vmem>>, %arg10: memref<16x8xf32, #tpu.memory_space<vmem>>, %arg11: memref<1x8xf32, #tpu.memory_space<vmem>>, %arg12: memref<1x8xf32, #tpu.memory_space<vmem>>, %arg13: memref<8x2xf32, #tpu.memory_space<vmem>>, %arg14: memref<1x2xf32, #tpu.memory_space<vmem>>, %arg15: memref<8x2xf32, #tpu.memory_space<vmem>>) attributes {dimension_semantics = [], scalar_prefetch = 0 : i64, scratch_operands = 0 : i64, tpu.core_type = #tpu.core_type<tc>} {
    %c0 = arith.constant 0 : index
    %c0_0 = arith.constant 0 : index
    %0 = vector.load %arg0[%c0, %c0_0] : memref<8x128xf32, #tpu.memory_space<vmem>>, vector<8x128xf32>
    %c0_1 = arith.constant 0 : index
    %c0_2 = arith.constant 0 : index
    %1 = vector.load %arg1[%c0_1, %c0_2] : memref<128x64xf32, #tpu.memory_space<vmem>>, vector<128x64xf32>
    %cst = arith.constant dense<0.000000e+00> : vector<8x64xf32>
    %2 = tpu.matmul %0, %1, %cst {dimension_numbers = #tpu.dot_dimension_numbers<[1], [0], [0], [1], [0, 0, 1, 1], [], []>} : vector<8x128xf32>, vector<128x64xf32>, vector<8x64xf32> -> vector<8x64xf32>
    %cst_3 = arith.constant dense<0.000000e+00> : vector<64xf32>
    %3 = vector.multi_reduction <add>, %2, %cst_3 [0] : vector<8x64xf32> to vector<64xf32>
    %4 = vector.shape_cast %3 : vector<64xf32> to vector<1x64xf32>
    %cst_4 = arith.constant 8.000000e+00 : f32
    %5 = vector.broadcast %cst_4 : f32 to vector<1x64xf32>
    %6 = arith.divf %4, %5 : vector<1x64xf32>
    %7 = arith.mulf %2, %2 : vector<8x64xf32>
    %cst_5 = arith.constant dense<0.000000e+00> : vector<64xf32>
    %8 = vector.multi_reduction <add>, %7, %cst_5 [0] : vector<8x64xf32> to vector<64xf32>
    %9 = vector.shape_cast %8 : vector<64xf32> to vector<1x64xf32>
    %cst_6 = arith.constant 8.000000e+00 : f32
    %10 = vector.broadcast %cst_6 : f32 to vector<1x64xf32>
    %11 = arith.divf %9, %10 : vector<1x64xf32>
    %12 = arith.mulf %6, %6 : vector<1x64xf32>
    %13 = arith.subf %11, %12 : vector<1x64xf32>
    %c0_7 = arith.constant 0 : index
    %c0_8 = arith.constant 0 : index
    %14 = vector.load %arg2[%c0_7, %c0_8] : memref<1x64xf32, #tpu.memory_space<vmem>>, vector<1x64xf32>
    %cst_9 = arith.constant 9.99999974E-6 : f32
    %15 = vector.broadcast %cst_9 : f32 to vector<1x64xf32>
    %16 = arith.addf %13, %15 : vector<1x64xf32>
    %17 = math.rsqrt %16 : vector<1x64xf32>
    %18 = arith.mulf %14, %17 : vector<1x64xf32>
    %c0_10 = arith.constant 0 : index
    %c0_11 = arith.constant 0 : index
    %19 = vector.load %arg3[%c0_10, %c0_11] : memref<1x64xf32, #tpu.memory_space<vmem>>, vector<1x64xf32>
    %20 = arith.mulf %6, %18 : vector<1x64xf32>
    %21 = arith.subf %19, %20 : vector<1x64xf32>
    %22 = vector.broadcast %18 : vector<1x64xf32> to vector<8x64xf32>
    %23 = arith.mulf %2, %22 : vector<8x64xf32>
    %24 = vector.broadcast %21 : vector<1x64xf32> to vector<8x64xf32>
    %25 = arith.addf %23, %24 : vector<8x64xf32>
    %cst_12 = arith.constant 0.000000e+00 : f32
    %26 = vector.broadcast %cst_12 : f32 to vector<8x64xf32>
    %27 = arith.maximumf %25, %26 : vector<8x64xf32>
    %c0_13 = arith.constant 0 : index
    %c0_14 = arith.constant 0 : index
    %28 = vector.load %arg4[%c0_13, %c0_14] : memref<64x32xf32, #tpu.memory_space<vmem>>, vector<64x32xf32>
    %cst_15 = arith.constant dense<0.000000e+00> : vector<8x32xf32>
    %29 = tpu.matmul %27, %28, %cst_15 {dimension_numbers = #tpu.dot_dimension_numbers<[1], [0], [0], [1], [0, 0, 1, 1], [], []>} : vector<8x64xf32>, vector<64x32xf32>, vector<8x32xf32> -> vector<8x32xf32>
    %cst_16 = arith.constant dense<0.000000e+00> : vector<32xf32>
    %30 = vector.multi_reduction <add>, %29, %cst_16 [0] : vector<8x32xf32> to vector<32xf32>
    %31 = vector.shape_cast %30 : vector<32xf32> to vector<1x32xf32>
    %cst_17 = arith.constant 8.000000e+00 : f32
    %32 = vector.broadcast %cst_17 : f32 to vector<1x32xf32>
    %33 = arith.divf %31, %32 : vector<1x32xf32>
    %34 = arith.mulf %29, %29 : vector<8x32xf32>
    %cst_18 = arith.constant dense<0.000000e+00> : vector<32xf32>
    %35 = vector.multi_reduction <add>, %34, %cst_18 [0] : vector<8x32xf32> to vector<32xf32>
    %36 = vector.shape_cast %35 : vector<32xf32> to vector<1x32xf32>
    %cst_19 = arith.constant 8.000000e+00 : f32
    %37 = vector.broadcast %cst_19 : f32 to vector<1x32xf32>
    %38 = arith.divf %36, %37 : vector<1x32xf32>
    %39 = arith.mulf %33, %33 : vector<1x32xf32>
    %40 = arith.subf %38, %39 : vector<1x32xf32>
    %c0_20 = arith.constant 0 : index
    %c0_21 = arith.constant 0 : index
    %41 = vector.load %arg5[%c0_20, %c0_21] : memref<1x32xf32, #tpu.memory_space<vmem>>, vector<1x32xf32>
    %cst_22 = arith.constant 9.99999974E-6 : f32
    %42 = vector.broadcast %cst_22 : f32 to vector<1x32xf32>
    %43 = arith.addf %40, %42 : vector<1x32xf32>
    %44 = math.rsqrt %43 : vector<1x32xf32>
    %45 = arith.mulf %41, %44 : vector<1x32xf32>
    %c0_23 = arith.constant 0 : index
    %c0_24 = arith.constant 0 : index
    %46 = vector.load %arg6[%c0_23, %c0_24] : memref<1x32xf32, #tpu.memory_space<vmem>>, vector<1x32xf32>
    %47 = arith.mulf %33, %45 : vector<1x32xf32>
    %48 = arith.subf %46, %47 : vector<1x32xf32>
    %49 = vector.broadcast %45 : vector<1x32xf32> to vector<8x32xf32>
    %50 = arith.mulf %29, %49 : vector<8x32xf32>
    %51 = vector.broadcast %48 : vector<1x32xf32> to vector<8x32xf32>
    %52 = arith.addf %50, %51 : vector<8x32xf32>
    %cst_25 = arith.constant 0.000000e+00 : f32
    %53 = vector.broadcast %cst_25 : f32 to vector<8x32xf32>
    %54 = arith.maximumf %52, %53 : vector<8x32xf32>
    %c0_26 = arith.constant 0 : index
    %c0_27 = arith.constant 0 : index
    %55 = vector.load %arg7[%c0_26, %c0_27] : memref<32x16xf32, #tpu.memory_space<vmem>>, vector<32x16xf32>
    %cst_28 = arith.constant dense<0.000000e+00> : vector<8x16xf32>
    %56 = tpu.matmul %54, %55, %cst_28 {dimension_numbers = #tpu.dot_dimension_numbers<[1], [0], [0], [1], [0, 0, 1, 1], [], []>} : vector<8x32xf32>, vector<32x16xf32>, vector<8x16xf32> -> vector<8x16xf32>
    %cst_29 = arith.constant dense<0.000000e+00> : vector<16xf32>
    %57 = vector.multi_reduction <add>, %56, %cst_29 [0] : vector<8x16xf32> to vector<16xf32>
    %58 = vector.shape_cast %57 : vector<16xf32> to vector<1x16xf32>
    %cst_30 = arith.constant 8.000000e+00 : f32
    %59 = vector.broadcast %cst_30 : f32 to vector<1x16xf32>
    %60 = arith.divf %58, %59 : vector<1x16xf32>
    %61 = arith.mulf %56, %56 : vector<8x16xf32>
    %cst_31 = arith.constant dense<0.000000e+00> : vector<16xf32>
    %62 = vector.multi_reduction <add>, %61, %cst_31 [0] : vector<8x16xf32> to vector<16xf32>
    %63 = vector.shape_cast %62 : vector<16xf32> to vector<1x16xf32>
    %cst_32 = arith.constant 8.000000e+00 : f32
    %64 = vector.broadcast %cst_32 : f32 to vector<1x16xf32>
    %65 = arith.divf %63, %64 : vector<1x16xf32>
    %66 = arith.mulf %60, %60 : vector<1x16xf32>
    %67 = arith.subf %65, %66 : vector<1x16xf32>
    %c0_33 = arith.constant 0 : index
    %c0_34 = arith.constant 0 : index
    %68 = vector.load %arg8[%c0_33, %c0_34] : memref<1x16xf32, #tpu.memory_space<vmem>>, vector<1x16xf32>
    %cst_35 = arith.constant 9.99999974E-6 : f32
    %69 = vector.broadcast %cst_35 : f32 to vector<1x16xf32>
    %70 = arith.addf %67, %69 : vector<1x16xf32>
    %71 = math.rsqrt %70 : vector<1x16xf32>
    %72 = arith.mulf %68, %71 : vector<1x16xf32>
    %c0_36 = arith.constant 0 : index
    %c0_37 = arith.constant 0 : index
    %73 = vector.load %arg9[%c0_36, %c0_37] : memref<1x16xf32, #tpu.memory_space<vmem>>, vector<1x16xf32>
    %74 = arith.mulf %60, %72 : vector<1x16xf32>
    %75 = arith.subf %73, %74 : vector<1x16xf32>
    %76 = vector.broadcast %72 : vector<1x16xf32> to vector<8x16xf32>
    %77 = arith.mulf %56, %76 : vector<8x16xf32>
    %78 = vector.broadcast %75 : vector<1x16xf32> to vector<8x16xf32>
    %79 = arith.addf %77, %78 : vector<8x16xf32>
    %cst_38 = arith.constant 0.000000e+00 : f32
    %80 = vector.broadcast %cst_38 : f32 to vector<8x16xf32>
    %81 = arith.maximumf %79, %80 : vector<8x16xf32>
    %c0_39 = arith.constant 0 : index
    %c0_40 = arith.constant 0 : index
    %82 = vector.load %arg10[%c0_39, %c0_40] : memref<16x8xf32, #tpu.memory_space<vmem>>, vector<16x8xf32>
    %cst_41 = arith.constant dense<0.000000e+00> : vector<8x8xf32>
    %83 = tpu.matmul %81, %82, %cst_41 {dimension_numbers = #tpu.dot_dimension_numbers<[1], [0], [0], [1], [0, 0, 1, 1], [], []>} : vector<8x16xf32>, vector<16x8xf32>, vector<8x8xf32> -> vector<8x8xf32>
    %cst_42 = arith.constant dense<0.000000e+00> : vector<8xf32>
    %84 = vector.multi_reduction <add>, %83, %cst_42 [0] : vector<8x8xf32> to vector<8xf32>
    %85 = vector.shape_cast %84 : vector<8xf32> to vector<1x8xf32>
    %cst_43 = arith.constant 8.000000e+00 : f32
    %86 = vector.broadcast %cst_43 : f32 to vector<1x8xf32>
    %87 = arith.divf %85, %86 : vector<1x8xf32>
    %88 = arith.mulf %83, %83 : vector<8x8xf32>
    %cst_44 = arith.constant dense<0.000000e+00> : vector<8xf32>
    %89 = vector.multi_reduction <add>, %88, %cst_44 [0] : vector<8x8xf32> to vector<8xf32>
    %90 = vector.shape_cast %89 : vector<8xf32> to vector<1x8xf32>
    %cst_45 = arith.constant 8.000000e+00 : f32
    %91 = vector.broadcast %cst_45 : f32 to vector<1x8xf32>
    %92 = arith.divf %90, %91 : vector<1x8xf32>
    %93 = arith.mulf %87, %87 : vector<1x8xf32>
    %94 = arith.subf %92, %93 : vector<1x8xf32>
    %c0_46 = arith.constant 0 : index
    %c0_47 = arith.constant 0 : index
    %95 = vector.load %arg11[%c0_46, %c0_47] : memref<1x8xf32, #tpu.memory_space<vmem>>, vector<1x8xf32>
    %cst_48 = arith.constant 9.99999974E-6 : f32
    %96 = vector.broadcast %cst_48 : f32 to vector<1x8xf32>
    %97 = arith.addf %94, %96 : vector<1x8xf32>
    %98 = math.rsqrt %97 : vector<1x8xf32>
    %99 = arith.mulf %95, %98 : vector<1x8xf32>
    %c0_49 = arith.constant 0 : index
    %c0_50 = arith.constant 0 : index
    %100 = vector.load %arg12[%c0_49, %c0_50] : memref<1x8xf32, #tpu.memory_space<vmem>>, vector<1x8xf32>
    %101 = arith.mulf %87, %99 : vector<1x8xf32>
    %102 = arith.subf %100, %101 : vector<1x8xf32>
    %103 = vector.broadcast %99 : vector<1x8xf32> to vector<8x8xf32>
    %104 = arith.mulf %83, %103 : vector<8x8xf32>
    %105 = vector.broadcast %102 : vector<1x8xf32> to vector<8x8xf32>
    %106 = arith.addf %104, %105 : vector<8x8xf32>
    %cst_51 = arith.constant 0.000000e+00 : f32
    %107 = vector.broadcast %cst_51 : f32 to vector<8x8xf32>
    %108 = arith.maximumf %106, %107 : vector<8x8xf32>
    %c0_52 = arith.constant 0 : index
    %c0_53 = arith.constant 0 : index
    %109 = vector.load %arg13[%c0_52, %c0_53] : memref<8x2xf32, #tpu.memory_space<vmem>>, vector<8x2xf32>
    %cst_54 = arith.constant dense<0.000000e+00> : vector<8x2xf32>
    %110 = tpu.matmul %108, %109, %cst_54 {dimension_numbers = #tpu.dot_dimension_numbers<[1], [0], [0], [1], [0, 0, 1, 1], [], []>} : vector<8x8xf32>, vector<8x2xf32>, vector<8x2xf32> -> vector<8x2xf32>
    %c0_55 = arith.constant 0 : index
    %c0_56 = arith.constant 0 : index
    %111 = vector.load %arg14[%c0_55, %c0_56] : memref<1x2xf32, #tpu.memory_space<vmem>>, vector<1x2xf32>
    %112 = vector.broadcast %111 : vector<1x2xf32> to vector<8x2xf32>
    %113 = arith.addf %110, %112 : vector<8x2xf32>
    %cst_57 = arith.constant 0.000000e+00 : f32
    %114 = vector.broadcast %cst_57 : f32 to vector<8x2xf32>
    %115 = arith.subf %114, %113 : vector<8x2xf32>
    %116 = math.exp %115 : vector<8x2xf32>
    %cst_58 = arith.constant 1.000000e+00 : f32
    %117 = vector.broadcast %cst_58 : f32 to vector<8x2xf32>
    %118 = arith.addf %117, %116 : vector<8x2xf32>
    %119 = tpu.reciprocal %118 {approx = true} : vector<8x2xf32> -> vector<8x2xf32>
    %c0_59 = arith.constant 0 : index
    %c0_60 = arith.constant 0 : index
    %120 = vector.load %arg15[%c0_59, %c0_60] : memref<8x2xf32, #tpu.memory_space<vmem>>, vector<8x2xf32>
    tpu.vector_store %arg15[%c0_59, %c0_60], %119 {strides = array<i32>} : memref<8x2xf32, #tpu.memory_space<vmem>>, vector<8x2xf32>,
    return
  }
}

</mosaic_0001>

<llo_original>
// kernel: tpu_custom_call.1
$region0: #{tpu_custom_call.1}
  #allocation0 [shape = 'u32[]', space=smem, size = 0x4, offset = 0x4, fixed_abs, tag = 'smem constant byte address 0x4 - core index']
  #allocation1 [shape = 'u32[144,128]{1,0:T(1,128)}', space=vmem, size = 0x12000, scoped, tag = 'internal scratch']
  %s0 = inlined_call_operand.vmem [shape: f32[8,128], index: 0, kind: input, shape index: {}]
  %s1 = inlined_call_operand.vmem [shape: f32[128,64], index: 1, kind: input, shape index: {}]
  %s2 = inlined_call_operand.vmem [shape: f32[1,64], index: 2, kind: input, shape index: {}]
  %s3 = inlined_call_operand.vmem [shape: f32[1,64], index: 3, kind: input, shape index: {}]
  %s4 = inlined_call_operand.vmem [shape: f32[64,32], index: 4, kind: input, shape index: {}]
  %s5 = inlined_call_operand.vmem [shape: f32[1,32], index: 5, kind: input, shape index: {}]
  %s6 = inlined_call_operand.vmem [shape: f32[1,32], index: 6, kind: input, shape index: {}]
  %s7 = inlined_call_operand.vmem [shape: f32[32,16], index: 7, kind: input, shape index: {}]
  %s8 = inlined_call_operand.vmem [shape: f32[1,16], index: 8, kind: input, shape index: {}]
  %s9 = inlined_call_operand.vmem [shape: f32[1,16], index: 9, kind: input, shape index: {}]
  %s10 = inlined_call_operand.vmem [shape: f32[16,8], index: 10, kind: input, shape index: {}]
  %s11 = inlined_call_operand.vmem [shape: f32[1,8], index: 11, kind: input, shape index: {}]
  %s12 = inlined_call_operand.vmem [shape: f32[1,8], index: 12, kind: input, shape index: {}]
  %s13 = inlined_call_operand.vmem [shape: f32[8,2], index: 13, kind: input, shape index: {}]
  %s14 = inlined_call_operand.vmem [shape: f32[1,2], index: 14, kind: input, shape index: {}]
  %s15 = inlined_call_operand.vmem [shape: f32[8,2], index: 15, kind: output, shape index: {}]
  %s16 = sld [smem:[#allocation0]]
  $region70: #{tpu_custom_call.1} parent=0
    _
  %s18 = ssub.s32 1, %s16
  %s19 = scalar_select 0, %s18, %s16
  // Predicated region
  $region2: #{tpu_custom_call.1} parent=0 // pred_check
    _
  $region3: #{tpu_custom_call.1} parent=0 // pred_check_branch
    %21 = sbr.rel (0) target = $region5
  $region4: #{tpu_custom_call.1} parent=0 // pred_region
    _
  $region5: #{tpu_custom_call.1} parent=0 // pred_fallthru
    _
  // Predicated region
  $region6: #{tpu_custom_call.1} parent=0 // pred_check
    _
  $region7: #{tpu_custom_call.1} parent=0 // pred_check_branch
    %23 = sbr.rel (0) target = $region9
  $region8: #{tpu_custom_call.1} parent=0 // pred_region
    _
  $region9: #{tpu_custom_call.1} parent=0 // pred_fallthru
    _
  // Predicated region
  $region10: #{tpu_custom_call.1} parent=0 // pred_check
    _
  $region11: #{tpu_custom_call.1} parent=0 // pred_check_branch
    %25 = sbr.rel (0) target = $region13
  $region12: #{tpu_custom_call.1} parent=0 // pred_region
    _
  $region13: #{tpu_custom_call.1} parent=0 // pred_fallthru
    _
  // Predicated region
  $region14: #{tpu_custom_call.1} parent=0 // pred_check
    _
  $region15: #{tpu_custom_call.1} parent=0 // pred_check_branch
    %27 = sbr.rel (0) target = $region17
  $region16: #{tpu_custom_call.1} parent=0 // pred_region
    _
  $region17: #{tpu_custom_call.1} parent=0 // pred_fallthru
    _
  // Predicated region
  $region18: #{tpu_custom_call.1} parent=0 // pred_check
    _
  $region19: #{tpu_custom_call.1} parent=0 // pred_check_branch
    %29 = sbr.rel (0) target = $region21
  $region20: #{tpu_custom_call.1} parent=0 // pred_region
    _
  $region21: #{tpu_custom_call.1} parent=0 // pred_fallthru
    _
  // Predicated region
  $region22: #{tpu_custom_call.1} parent=0 // pred_check
    _
  $region23: #{tpu_custom_call.1} parent=0 // pred_check_branch
    %31 = sbr.rel (0) target = $region25
  $region24: #{tpu_custom_call.1} parent=0 // pred_region
    _
  $region25: #{tpu_custom_call.1} parent=0 // pred_fallthru
    _
  // Predicated region
  $region26: #{tpu_custom_call.1} parent=0 // pred_check
    _
  $region27: #{tpu_custom_call.1} parent=0 // pred_check_branch
    %33 = sbr.rel (0) target = $region29
  $region28: #{tpu_custom_call.1} parent=0 // pred_region
    _
  $region29: #{tpu_custom_call.1} parent=0 // pred_fallthru
    _
  // Predicated region
  $region30: #{tpu_custom_call.1} parent=0 // pred_check
    _
  $region31: #{tpu_custom_call.1} parent=0 // pred_check_branch
    %35 = sbr.rel (0) target = $region33
  $region32: #{tpu_custom_call.1} parent=0 // pred_region
    _
  $region33: #{tpu_custom_call.1} parent=0 // pred_fallthru
    _
  // Predicated region
  $region34: #{tpu_custom_call.1} parent=0 // pred_check
    _
  $region35: #{tpu_custom_call.1} parent=0 // pred_check_branch
    %37 = sbr.rel (0) target = $region37
  $region36: #{tpu_custom_call.1} parent=0 // pred_region
    _
  $region37: #{tpu_custom_call.1} parent=0 // pred_fallthru
    _
  // Predicated region
  $region38: #{tpu_custom_call.1} parent=0 // pred_check
    _
  $region39: #{tpu_custom_call.1} parent=0 // pred_check_branch
    %39 = sbr.rel (0) target = $region41
  $region40: #{tpu_custom_call.1} parent=0 // pred_region
    _
  $region41: #{tpu_custom_call.1} parent=0 // pred_fallthru
    _
  // Predicated region
  $region42: #{tpu_custom_call.1} parent=0 // pred_check
    _
  $region43: #{tpu_custom_call.1} parent=0 // pred_check_branch
    %41 = sbr.rel (0) target = $region45
  $region44: #{tpu_custom_call.1} parent=0 // pred_region
    _
  $region45: #{tpu_custom_call.1} parent=0 // pred_fallthru
    _
  // Predicated region
  $region46: #{tpu_custom_call.1} parent=0 // pred_check
    _
  $region47: #{tpu_custom_call.1} parent=0 // pred_check_branch
    %43 = sbr.rel (0) target = $region49
  $region48: #{tpu_custom_call.1} parent=0 // pred_region
    _
  $region49: #{tpu_custom_call.1} parent=0 // pred_fallthru
    _
  // Predicated region
  $region50: #{tpu_custom_call.1} parent=0 // pred_check
    _
  $region51: #{tpu_custom_call.1} parent=0 // pred_check_branch
    %45 = sbr.rel (0) target = $region53
  $region52: #{tpu_custom_call.1} parent=0 // pred_region
    _
  $region53: #{tpu_custom_call.1} parent=0 // pred_fallthru
    _
  // Predicated region
  $region54: #{tpu_custom_call.1} parent=0 // pred_check
    _
  $region55: #{tpu_custom_call.1} parent=0 // pred_check_branch
    %47 = sbr.rel (0) target = $region57
  $region56: #{tpu_custom_call.1} parent=0 // pred_region
    _
  $region57: #{tpu_custom_call.1} parent=0 // pred_fallthru
    _
  // Predicated region
  $region58: #{tpu_custom_call.1} parent=0 // pred_check
    _
  $region59: #{tpu_custom_call.1} parent=0 // pred_check_branch
    %49 = sbr.rel (0) target = $region61
  $region60: #{tpu_custom_call.1} parent=0 // pred_region
    _
  $region61: #{tpu_custom_call.1} parent=0 // pred_fallthru
    _
  %v50 = vld [vmem:[%s0] sm:$0xff]
  %v51 = vld [vmem:[%s1] sm:$0xff]
  %v52 = vld [vmem:[%s1 + $0x8] sm:$0xff]
  %v53 = vld [vmem:[%s1 + $0x10] sm:$0xff]
  %v54 = vld [vmem:[%s1 + $0x18] sm:$0xff]
  %v55 = vld [vmem:[%s1 + $0x20] sm:$0xff]
  %v56 = vld [vmem:[%s1 + $0x28] sm:$0xff]
  %v57 = vld [vmem:[%s1 + $0x30] sm:$0xff]
  %v58 = vld [vmem:[%s1 + $0x38] sm:$0xff]
  %v59 = vld [vmem:[%s1 + $0x40] sm:$0xff]
  %v60 = vld [vmem:[%s1 + $0x48] sm:$0xff]
  %v61 = vld [vmem:[%s1 + $0x50] sm:$0xff]
  %v62 = vld [vmem:[%s1 + $0x58] sm:$0xff]
  %v63 = vld [vmem:[%s1 + $0x60] sm:$0xff]
  %v64 = vld [vmem:[%s1 + $0x68] sm:$0xff]
  %v65 = vld [vmem:[%s1 + $0x70] sm:$0xff]
  %v66 = vld [vmem:[%s1 + $0x78] sm:$0xff]
  %67 = vmatprep.subr.mxu0 0.0
  %68 = vmatpush1.msra.mxu0 %v51
  %69 = vmatprep.subr.mxu0 0.0
  %70 = vmatpush1.msra.mxu0 %v52
  %71 = vmatprep.subr.mxu0 0.0
  %72 = vmatpush1.msra.mxu0 %v53
  %73 = vmatprep.subr.mxu0 0.0
  %74 = vmatpush1.msra.mxu0 %v54
  %75 = vmatprep.subr.mxu0 0.0
  %76 = vmatpush1.msra.mxu0 %v55
  %77 = vmatprep.subr.mxu0 0.0
  %78 = vmatpush1.msra.mxu0 %v56
  %79 = vmatprep.subr.mxu0 0.0
  %80 = vmatpush1.msra.mxu0 %v57
  %81 = vmatprep.subr.mxu0 0.0
  %82 = vmatpush1.msra.mxu0 %v58
  %83 = vmatprep.subr.mxu0 0.0
  %84 = vmatpush1.msra.mxu0 %v59
  %85 = vmatprep.subr.mxu0 0.0
  %86 = vmatpush1.msra.mxu0 %v60
  %87 = vmatprep.subr.mxu0 0.0
  %88 = vmatpush1.msra.mxu0 %v61
  %89 = vmatprep.subr.mxu0 0.0
  %90 = vmatpush1.msra.mxu0 %v62
  %91 = vmatprep.subr.mxu0 0.0
  %92 = vmatpush1.msra.mxu0 %v63
  %93 = vmatprep.subr.mxu0 0.0
  %94 = vmatpush1.msra.mxu0 %v64
  %95 = vmatprep.subr.mxu0 0.0
  %96 = vmatpush1.msra.mxu0 %v65
  %97 = vmatprep.subr.mxu0 0.0
  %98 = vmatpush1.msra.mxu0 %v66
  %99 = vmatprep.subr.mxu0 0.0
  %100 = vmatpush1.msra.mxu0 0.0
  %101 = vmatprep.subr.mxu0 0.0
  %102 = vmatpush1.msra.mxu0 0.0
  %103 = vmatprep.subr.mxu0 0.0
  %104 = vmatpush1.msra.mxu0 0.0
  %105 = vmatprep.subr.mxu0 0.0
  %106 = vmatpush1.msra.mxu0 0.0
  %107 = vmatprep.subr.mxu0 0.0
  %108 = vmatpush1.msra.mxu0 0.0
  %109 = vmatprep.subr.mxu0 0.0
  %110 = vmatpush1.msra.mxu0 0.0
  %111 = vmatprep.subr.mxu0 0.0
  %112 = vmatpush1.msra.mxu0 0.0
  %113 = vmatprep.subr.mxu0 0.0
  %114 = vmatpush1.msra.mxu0 0.0
  %115 = vmatprep.subr.mxu0 0.0
  %116 = vmatpush1.msra.mxu0 0.0
  %117 = vmatprep.subr.mxu0 0.0
  %118 = vmatpush1.msra.mxu0 0.0
  %119 = vmatprep.subr.mxu0 0.0
  %120 = vmatpush1.msra.mxu0 0.0
  %121 = vmatprep.subr.mxu0 0.0
  %122 = vmatpush1.msra.mxu0 0.0
  %123 = vmatprep.subr.mxu0 0.0
  %124 = vmatpush1.msra.mxu0 0.0
  %125 = vmatprep.subr.mxu0 0.0
  %126 = vmatpush1.msra.mxu0 0.0
  %127 = vmatprep.subr.mxu0 0.0
  %128 = vmatpush1.msra.mxu0 0.0
  %129 = vmatprep.subr.mxu0 0.0
  %130 = vmatpush1.msra.mxu0 0.0
  %131 = vmatprep.mubr.f32.mxu0 0.0
  %132 = vmatmul.mubr.f32.gmra.mrb[0].mxu0 %v50
  %v133 = vpop.f32.mrb[0].mxu0
  %v134 = vadd.f32 0.0, %v133
  %v135 = vpop.f32.mrb[0].mxu0
  %136 = vdwg.mxu0
  %vm137 = vcmask 523264
  %v138 = vsel %vm137, %v134, 0.0
  %v139 = vrot.slane %v138, 4
  %v140 = vadd.f32 %v138, %v139
  %v141 = vrot.slane %v140, 2
  %v142 = vadd.f32 %v140, %v141
  %v143 = vrot.slane %v142, 1
  %v144 = vadd.f32 %v142, %v143
  %v145 = vrcp.pop 8.0
  %v146 = vmul.f32 %v144, %v145
  %v147 = vmul.f32 %v134, %v134
  %v148 = vsel %vm137, %v147, 0.0
  %v149 = vrot.slane %v148, 4
  %v150 = vadd.f32 %v148, %v149
  %v151 = vrot.slane %v150, 2
  %v152 = vadd.f32 %v150, %v151
  %v153 = vrot.slane %v152, 1
  %v154 = vadd.f32 %v152, %v153
  %v155 = vmul.f32 %v154, %v145
  %v156 = vmul.f32 %v146, %v146
  %v157 = vsub.f32 %v155, %v156
  %v158 = vld [vmem:[%s2] sm:$0x1]
  %v159 = vadd.f32 %v157, 1e-05
  %v160 = vrsqrt.pop %v159
  %v161 = vmul.f32 %v158, %v160
  %v162 = vld [vmem:[%s3] sm:$0x1]
  %v163 = vmul.f32 %v146, %v161
  %v164 = vsub.f32 %v162, %v163
  %v166 = vlaneseq
  %v167 = vshrl.u32 %v166, 7
  %v168 = vsub.s32 0, %v167
  %v169 = vrot.slane %v161, %v168
  %v171 = vmul.f32 %v134, %v169
  %v173 = vlaneseq
  %v174 = vshrl.u32 %v173, 7
  %v175 = vsub.s32 0, %v174
  %v176 = vrot.slane %v164, %v175
  %v178 = vadd.f32 %v171, %v176
  %v179 = vmax.f32 %v178, 0.0
  %v180 = vld [vmem:[%s4] sm:$0xff]
  %v181 = vld [vmem:[%s4 + $0x8] sm:$0xff]
  %v182 = vld [vmem:[%s4 + $0x10] sm:$0xff]
  %v183 = vld [vmem:[%s4 + $0x18] sm:$0xff]
  %v184 = vld [vmem:[%s4 + $0x20] sm:$0xff]
  %v185 = vld [vmem:[%s4 + $0x28] sm:$0xff]
  %v186 = vld [vmem:[%s4 + $0x30] sm:$0xff]
  %v187 = vld [vmem:[%s4 + $0x38] sm:$0xff]
  %v189 = vsel %vm137, %v179, 0
  %191 = vmatprep.subr.mxu0 0.0
  %192 = vmatpush1.msra.mxu0 %v180
  %193 = vmatprep.subr.mxu0 0.0
  %194 = vmatpush1.msra.mxu0 %v181
  %195 = vmatprep.subr.mxu0 0.0
  %196 = vmatpush1.msra.mxu0 %v182
  %197 = vmatprep.subr.mxu0 0.0
  %198 = vmatpush1.msra.mxu0 %v183
  %199 = vmatprep.subr.mxu0 0.0
  %200 = vmatpush1.msra.mxu0 %v184
  %201 = vmatprep.subr.mxu0 0.0
  %202 = vmatpush1.msra.mxu0 %v185
  %203 = vmatprep.subr.mxu0 0.0
  %204 = vmatpush1.msra.mxu0 %v186
  %205 = vmatprep.subr.mxu0 0.0
  %206 = vmatpush1.msra.mxu0 %v187
  %207 = vmatprep.subr.mxu0 0.0
  %208 = vmatpush1.msra.mxu0 0.0
  %209 = vmatprep.subr.mxu0 0.0
  %210 = vmatpush1.msra.mxu0 0.0
  %211 = vmatprep.subr.mxu0 0.0
  %212 = vmatpush1.msra.mxu0 0.0
  %213 = vmatprep.subr.mxu0 0.0
  %214 = vmatpush1.msra.mxu0 0.0
  %215 = vmatprep.subr.mxu0 0.0
  %216 = vmatpush1.msra.mxu0 0.0
  %217 = vmatprep.subr.mxu0 0.0
  %218 = vmatpush1.msra.mxu0 0.0
  %219 = vmatprep.subr.mxu0 0.0
  %220 = vmatpush1.msra.mxu0 0.0
  %221 = vmatprep.subr.mxu0 0.0
  %222 = vmatpush1.msra.mxu0 0.0
  %223 = vmatprep.subr.mxu0 0.0
  %224 = vmatpush1.msra.mxu0 0.0
  %225 = vmatprep.subr.mxu0 0.0
  %226 = vmatpush1.msra.mxu0 0.0
  %227 = vmatprep.subr.mxu0 0.0
  %228 = vmatpush1.msra.mxu0 0.0
  %229 = vmatprep.subr.mxu0 0.0
  %230 = vmatpush1.msra.mxu0 0.0
  %231 = vmatprep.subr.mxu0 0.0
  %232 = vmatpush1.msra.mxu0 0.0
  %233 = vmatprep.subr.mxu0 0.0
  %234 = vmatpush1.msra.mxu0 0.0
  %235 = vmatprep.subr.mxu0 0.0
  %236 = vmatpush1.msra.mxu0 0.0
  %237 = vmatprep.subr.mxu0 0.0
  %238 = vmatpush1.msra.mxu0 0.0
  %239 = vmatprep.subr.mxu0 0.0
  %240 = vmatpush1.msra.mxu0 0.0
  %241 = vmatprep.subr.mxu0 0.0
  %242 = vmatpush1.msra.mxu0 0.0
  %243 = vmatprep.subr.mxu0 0.0
  %244 = vmatpush1.msra.mxu0 0.0
  %245 = vmatprep.subr.mxu0 0.0
  %246 = vmatpush1.msra.mxu0 0.0
  %247 = vmatprep.subr.mxu0 0.0
  %248 = vmatpush1.msra.mxu0 0.0
  %249 = vmatprep.subr.mxu0 0.0
  %250 = vmatpush1.msra.mxu0 0.0
  %251 = vmatprep.subr.mxu0 0.0
  %252 = vmatpush1.msra.mxu0 0.0
  %253 = vmatprep.subr.mxu0 0.0
  %254 = vmatpush1.msra.mxu0 0.0
  %255 = vmatprep.mubr.f32.mxu0 0.0
  %256 = vmatmul.mubr.f32.gmra.mrb[0].mxu0 %v189
  %v257 = vpop.f32.mrb[0].mxu0
  %v258 = vadd.f32 0.0, %v257
  %v259 = vpop.f32.mrb[0].mxu0
  %260 = vdwg.mxu0
  %vm261 = vcmask 261120
  %v262 = vsel %vm261, %v258, 0.0
  %v263 = vrot.slane %v262, 4
  %v264 = vadd.f32 %v262, %v263
  %v265 = vrot.slane %v264, 2
  %v266 = vadd.f32 %v264, %v265
  %v267 = vrot.slane %v266, 1
  %v268 = vadd.f32 %v266, %v267
  %v269 = vmul.f32 %v268, %v145
  %v270 = vmul.f32 %v258, %v258
  %v271 = vsel %vm261, %v270, 0.0
  %v272 = vrot.slane %v271, 4
  %v273 = vadd.f32 %v271, %v272
  %v274 = vrot.slane %v273, 2
  %v275 = vadd.f32 %v273, %v274
  %v276 = vrot.slane %v275, 1
  %v277 = vadd.f32 %v275, %v276
  %v278 = vmul.f32 %v277, %v145
  %v279 = vmul.f32 %v269, %v269
  %v280 = vsub.f32 %v278, %v279
  %v281 = vld [vmem:[%s5] sm:$0x1]
  %v282 = vadd.f32 %v280, 1e-05
  %v283 = vrsqrt.pop %v282
  %v284 = vmul.f32 %v281, %v283
  %v285 = vld [vmem:[%s6] sm:$0x1]
  %v286 = vmul.f32 %v269, %v284
  %v287 = vsub.f32 %v285, %v286
  %v289 = vlaneseq
  %v290 = vshrl.u32 %v289, 7
  %v291 = vsub.s32 0, %v290
  %v292 = vrot.slane %v284, %v291
  %v294 = vmul.f32 %v258, %v292
  %v296 = vlaneseq
  %v297 = vshrl.u32 %v296, 7
  %v298 = vsub.s32 0, %v297
  %v299 = vrot.slane %v287, %v298
  %v301 = vadd.f32 %v294, %v299
  %v302 = vmax.f32 %v301, 0.0
  %v303 = vld [vmem:[%s7] sm:$0xff]
  %v304 = vld [vmem:[%s7 + $0x8] sm:$0xff]
  %v305 = vld [vmem:[%s7 + $0x10] sm:$0xff]
  %v306 = vld [vmem:[%s7 + $0x18] sm:$0xff]
  %v308 = vsel %vm261, %v302, 0
  %310 = vmatprep.subr.mxu0 0.0
  %311 = vmatpush1.msra.mxu0 %v303
  %312 = vmatprep.subr.mxu0 0.0
  %313 = vmatpush1.msra.mxu0 %v304
  %314 = vmatprep.subr.mxu0 0.0
  %315 = vmatpush1.msra.mxu0 %v305
  %316 = vmatprep.subr.mxu0 0.0
  %317 = vmatpush1.msra.mxu0 %v306
  %318 = vmatprep.subr.mxu0 0.0
  %319 = vmatpush1.msra.mxu0 0.0
  %320 = vmatprep.subr.mxu0 0.0
  %321 = vmatpush1.msra.mxu0 0.0
  %322 = vmatprep.subr.mxu0 0.0
  %323 = vmatpush1.msra.mxu0 0.0
  %324 = vmatprep.subr.mxu0 0.0
  %325 = vmatpush1.msra.mxu0 0.0
  %326 = vmatprep.subr.mxu0 0.0
  %327 = vmatpush1.msra.mxu0 0.0
  %328 = vmatprep.subr.mxu0 0.0
  %329 = vmatpush1.msra.mxu0 0.0
  %330 = vmatprep.subr.mxu0 0.0
  %331 = vmatpush1.msra.mxu0 0.0
  %332 = vmatprep.subr.mxu0 0.0
  %333 = vmatpush1.msra.mxu0 0.0
  %334 = vmatprep.subr.mxu0 0.0
  %335 = vmatpush1.msra.mxu0 0.0
  %336 = vmatprep.subr.mxu0 0.0
  %337 = vmatpush1.msra.mxu0 0.0
  %338 = vmatprep.subr.mxu0 0.0
  %339 = vmatpush1.msra.mxu0 0.0
  %340 = vmatprep.subr.mxu0 0.0
  %341 = vmatpush1.msra.mxu0 0.0
  %342 = vmatprep.subr.mxu0 0.0
  %343 = vmatpush1.msra.mxu0 0.0
  %344 = vmatprep.subr.mxu0 0.0
  %345 = vmatpush1.msra.mxu0 0.0
  %346 = vmatprep.subr.mxu0 0.0
  %347 = vmatpush1.msra.mxu0 0.0
  %348 = vmatprep.subr.mxu0 0.0
  %349 = vmatpush1.msra.mxu0 0.0
  %350 = vmatprep.subr.mxu0 0.0
  %351 = vmatpush1.msra.mxu0 0.0
  %352 = vmatprep.subr.mxu0 0.0
  %353 = vmatpush1.msra.mxu0 0.0
  %354 = vmatprep.subr.mxu0 0.0
  %355 = vmatpush1.msra.mxu0 0.0
  %356 = vmatprep.subr.mxu0 0.0
  %357 = vmatpush1.msra.mxu0 0.0
  %358 = vmatprep.subr.mxu0 0.0
  %359 = vmatpush1.msra.mxu0 0.0
  %360 = vmatprep.subr.mxu0 0.0
  %361 = vmatpush1.msra.mxu0 0.0
  %362 = vmatprep.subr.mxu0 0.0
  %363 = vmatpush1.msra.mxu0 0.0
  %364 = vmatprep.subr.mxu0 0.0
  %365 = vmatpush1.msra.mxu0 0.0
  %366 = vmatprep.subr.mxu0 0.0
  %367 = vmatpush1.msra.mxu0 0.0
  %368 = vmatprep.subr.mxu0 0.0
  %369 = vmatpush1.msra.mxu0 0.0
  %370 = vmatprep.subr.mxu0 0.0
  %371 = vmatpush1.msra.mxu0 0.0
  %372 = vmatprep.subr.mxu0 0.0
  %373 = vmatpush1.msra.mxu0 0.0
  %374 = vmatprep.mubr.f32.mxu0 0.0
  %375 = vmatmul.mubr.f32.gmra.mrb[0].mxu0 %v308
  %v376 = vpop.f32.mrb[0].mxu0
  %v377 = vadd.f32 0.0, %v376
  %v378 = vpop.f32.mrb[0].mxu0
  %379 = vdwg.mxu0
  %vm380 = vcmask 130048
  %v381 = vsel %vm380, %v377, 0.0
  %v382 = vrot.slane %v381, 4
  %v383 = vadd.f32 %v381, %v382
  %v384 = vrot.slane %v383, 2
  %v385 = vadd.f32 %v383, %v384
  %v386 = vrot.slane %v385, 1
  %v387 = vadd.f32 %v385, %v386
  %v388 = vmul.f32 %v387, %v145
  %v389 = vmul.f32 %v377, %v377
  %v390 = vsel %vm380, %v389, 0.0
  %v391 = vrot.slane %v390, 4
  %v392 = vadd.f32 %v390, %v391
  %v393 = vrot.slane %v392, 2
  %v394 = vadd.f32 %v392, %v393
  %v395 = vrot.slane %v394, 1
  %v396 = vadd.f32 %v394, %v395
  %v397 = vmul.f32 %v396, %v145
  %v398 = vmul.f32 %v388, %v388
  %v399 = vsub.f32 %v397, %v398
  %v400 = vld [vmem:[%s8] sm:$0x1]
  %v401 = vadd.f32 %v399, 1e-05
  %v402 = vrsqrt.pop %v401
  %v403 = vmul.f32 %v400, %v402
  %v404 = vld [vmem:[%s9] sm:$0x1]
  %v405 = vmul.f32 %v388, %v403
  %v406 = vsub.f32 %v404, %v405
  %v408 = vlaneseq
  %v409 = vshrl.u32 %v408, 7
  %v410 = vsub.s32 0, %v409
  %v411 = vrot.slane %v403, %v410
  %v413 = vmul.f32 %v377, %v411
  %v415 = vlaneseq
  %v416 = vshrl.u32 %v415, 7
  %v417 = vsub.s32 0, %v416
  %v418 = vrot.slane %v406, %v417
  %v420 = vadd.f32 %v413, %v418
  %v421 = vmax.f32 %v420, 0.0
  %v422 = vld [vmem:[%s10] sm:$0xff]
  %v423 = vld [vmem:[%s10 + $0x8] sm:$0xff]
  %v425 = vsel %vm380, %v421, 0
  %427 = vmatprep.subr.mxu0 0.0
  %428 = vmatpush1.msra.mxu0 %v422
  %429 = vmatprep.subr.mxu0 0.0
  %430 = vmatpush1.msra.mxu0 %v423
  %431 = vmatprep.subr.mxu0 0.0
  %432 = vmatpush1.msra.mxu0 0.0
  %433 = vmatprep.subr.mxu0 0.0
  %434 = vmatpush1.msra.mxu0 0.0
  %435 = vmatprep.subr.mxu0 0.0
  %436 = vmatpush1.msra.mxu0 0.0
  %437 = vmatprep.subr.mxu0 0.0
  %438 = vmatpush1.msra.mxu0 0.0
  %439 = vmatprep.subr.mxu0 0.0
  %440 = vmatpush1.msra.mxu0 0.0
  %441 = vmatprep.subr.mxu0 0.0
  %442 = vmatpush1.msra.mxu0 0.0
  %443 = vmatprep.subr.mxu0 0.0
  %444 = vmatpush1.msra.mxu0 0.0
  %445 = vmatprep.subr.mxu0 0.0
  %446 = vmatpush1.msra.mxu0 0.0
  %447 = vmatprep.subr.mxu0 0.0
  %448 = vmatpush1.msra.mxu0 0.0
  %449 = vmatprep.subr.mxu0 0.0
  %450 = vmatpush1.msra.mxu0 0.0
  %451 = vmatprep.subr.mxu0 0.0
  %452 = vmatpush1.msra.mxu0 0.0
  %453 = vmatprep.subr.mxu0 0.0
  %454 = vmatpush1.msra.mxu0 0.0
  %455 = vmatprep.subr.mxu0 0.0
  %456 = vmatpush1.msra.mxu0 0.0
  %457 = vmatprep.subr.mxu0 0.0
  %458 = vmatpush1.msra.mxu0 0.0
  %459 = vmatprep.subr.mxu0 0.0
  %460 = vmatpush1.msra.mxu0 0.0
  %461 = vmatprep.subr.mxu0 0.0
  %462 = vmatpush1.msra.mxu0 0.0
  %463 = vmatprep.subr.mxu0 0.0
  %464 = vmatpush1.msra.mxu0 0.0
  %465 = vmatprep.subr.mxu0 0.0
  %466 = vmatpush1.msra.mxu0 0.0
  %467 = vmatprep.subr.mxu0 0.0
  %468 = vmatpush1.msra.mxu0 0.0
  %469 = vmatprep.subr.mxu0 0.0
  %470 = vmatpush1.msra.mxu0 0.0
  %471 = vmatprep.subr.mxu0 0.0
  %472 = vmatpush1.msra.mxu0 0.0
  %473 = vmatprep.subr.mxu0 0.0
  %474 = vmatpush1.msra.mxu0 0.0
  %475 = vmatprep.subr.mxu0 0.0
  %476 = vmatpush1.msra.mxu0 0.0
  %477 = vmatprep.subr.mxu0 0.0
  %478 = vmatpush1.msra.mxu0 0.0
  %479 = vmatprep.subr.mxu0 0.0
  %480 = vmatpush1.msra.mxu0 0.0
  %481 = vmatprep.subr.mxu0 0.0
  %482 = vmatpush1.msra.mxu0 0.0
  %483 = vmatprep.subr.mxu0 0.0
  %484 = vmatpush1.msra.mxu0 0.0
  %485 = vmatprep.subr.mxu0 0.0
  %486 = vmatpush1.msra.mxu0 0.0
  %487 = vmatprep.subr.mxu0 0.0
  %488 = vmatpush1.msra.mxu0 0.0
  %489 = vmatprep.subr.mxu0 0.0
  %490 = vmatpush1.msra.mxu0 0.0
  %491 = vmatprep.mubr.f32.mxu0 0.0
  %492 = vmatmul.mubr.f32.gmra.mrb[0].mxu0 %v425
  %v493 = vpop.f32.mrb[0].mxu0
  %v494 = vadd.f32 0.0, %v493
  %v495 = vpop.f32.mrb[0].mxu0
  %496 = vdwg.mxu0
  %vm497 = vcmask 64512
  %v498 = vsel %vm497, %v494, 0.0
  %v499 = vrot.slane %v498, 4
  %v500 = vadd.f32 %v498, %v499
  %v501 = vrot.slane %v500, 2
  %v502 = vadd.f32 %v500, %v501
  %v503 = vrot.slane %v502, 1
  %v504 = vadd.f32 %v502, %v503
  %v505 = vmul.f32 %v504, %v145
  %v506 = vmul.f32 %v494, %v494
  %v507 = vsel %vm497, %v506, 0.0
  %v508 = vrot.slane %v507, 4
  %v509 = vadd.f32 %v507, %v508
  %v510 = vrot.slane %v509, 2
  %v511 = vadd.f32 %v509, %v510
  %v512 = vrot.slane %v511, 1
  %v513 = vadd.f32 %v511, %v512
  %v514 = vmul.f32 %v513, %v145
  %v515 = vmul.f32 %v505, %v505
  %v516 = vsub.f32 %v514, %v515
  %v517 = vld [vmem:[%s11] sm:$0x1]
  %v518 = vadd.f32 %v516, 1e-05
  %v519 = vrsqrt.pop %v518
  %v520 = vmul.f32 %v517, %v519
  %v521 = vld [vmem:[%s12] sm:$0x1]
  %v522 = vmul.f32 %v505, %v520
  %v523 = vsub.f32 %v521, %v522
  %v525 = vlaneseq
  %v526 = vshrl.u32 %v525, 7
  %v527 = vsub.s32 0, %v526
  %v528 = vrot.slane %v520, %v527
  %v530 = vmul.f32 %v494, %v528
  %v532 = vlaneseq
  %v533 = vshrl.u32 %v532, 7
  %v534 = vsub.s32 0, %v533
  %v535 = vrot.slane %v523, %v534
  %v537 = vadd.f32 %v530, %v535
  %v538 = vmax.f32 %v537, 0.0
  %v539 = vld [vmem:[%s13] sm:$0xff]
  %v540 = vld [vmem:[%s14] sm:$0x1]
  %v542 = vlaneseq
  %v543 = vshrl.u32 %v542, 7
  %v544 = vsub.s32 0, %v543
  %v545 = vrot.slane %v540, %v544
  %v548 = vsel %vm497, %v538, 0
  %550 = vmatprep.subr.mxu0 0.0
  %551 = vmatpush1.msra.mxu0 %v539
  %552 = vmatprep.subr.mxu0 0.0
  %553 = vmatpush1.msra.mxu0 0.0
  %554 = vmatprep.subr.mxu0 0.0
  %555 = vmatpush1.msra.mxu0 0.0
  %556 = vmatprep.subr.mxu0 0.0
  %557 = vmatpush1.msra.mxu0 0.0
  %558 = vmatprep.subr.mxu0 0.0
  %559 = vmatpush1.msra.mxu0 0.0
  %560 = vmatprep.subr.mxu0 0.0
  %561 = vmatpush1.msra.mxu0 0.0
  %562 = vmatprep.subr.mxu0 0.0
  %563 = vmatpush1.msra.mxu0 0.0
  %564 = vmatprep.subr.mxu0 0.0
  %565 = vmatpush1.msra.mxu0 0.0
  %566 = vmatprep.subr.mxu0 0.0
  %567 = vmatpush1.msra.mxu0 0.0
  %568 = vmatprep.subr.mxu0 0.0
  %569 = vmatpush1.msra.mxu0 0.0
  %570 = vmatprep.subr.mxu0 0.0
  %571 = vmatpush1.msra.mxu0 0.0
  %572 = vmatprep.subr.mxu0 0.0
  %573 = vmatpush1.msra.mxu0 0.0
  %574 = vmatprep.subr.mxu0 0.0
  %575 = vmatpush1.msra.mxu0 0.0
  %576 = vmatprep.subr.mxu0 0.0
  %577 = vmatpush1.msra.mxu0 0.0
  %578 = vmatprep.subr.mxu0 0.0
  %579 = vmatpush1.msra.mxu0 0.0
  %580 = vmatprep.subr.mxu0 0.0
  %581 = vmatpush1.msra.mxu0 0.0
  %582 = vmatprep.subr.mxu0 0.0
  %583 = vmatpush1.msra.mxu0 0.0
  %584 = vmatprep.subr.mxu0 0.0
  %585 = vmatpush1.msra.mxu0 0.0
  %586 = vmatprep.subr.mxu0 0.0
  %587 = vmatpush1.msra.mxu0 0.0
  %588 = vmatprep.subr.mxu0 0.0
  %589 = vmatpush1.msra.mxu0 0.0
  %590 = vmatprep.subr.mxu0 0.0
  %591 = vmatpush1.msra.mxu0 0.0
  %592 = vmatprep.subr.mxu0 0.0
  %593 = vmatpush1.msra.mxu0 0.0
  %594 = vmatprep.subr.mxu0 0.0
  %595 = vmatpush1.msra.mxu0 0.0
  %596 = vmatprep.subr.mxu0 0.0
  %597 = vmatpush1.msra.mxu0 0.0
  %598 = vmatprep.subr.mxu0 0.0
  %599 = vmatpush1.msra.mxu0 0.0
  %600 = vmatprep.subr.mxu0 0.0
  %601 = vmatpush1.msra.mxu0 0.0
  %602 = vmatprep.subr.mxu0 0.0
  %603 = vmatpush1.msra.mxu0 0.0
  %604 = vmatprep.subr.mxu0 0.0
  %605 = vmatpush1.msra.mxu0 0.0
  %606 = vmatprep.subr.mxu0 0.0
  %607 = vmatpush1.msra.mxu0 0.0
  %608 = vmatprep.subr.mxu0 0.0
  %609 = vmatpush1.msra.mxu0 0.0
  %610 = vmatprep.subr.mxu0 0.0
  %611 = vmatpush1.msra.mxu0 0.0
  %612 = vmatprep.subr.mxu0 0.0
  %613 = vmatpush1.msra.mxu0 0.0
  %614 = vmatprep.mubr.f32.mxu0 0.0
  %615 = vmatmul.mubr.f32.gmra.mrb[0].mxu0 %v548
  %v616 = vpop.f32.mrb[0].mxu0
  %v617 = vadd.f32 %v545, %v616
  %v618 = vpop.f32.mrb[0].mxu0
  %619 = vdwg.mxu0
  %v620 = vsub.f32 0.0, %v617
  %v621 = vmul.f32 %v620, 1.442695
  %v622 = vpow.pop %v621
  %v623 = vadd.f32 %v622, 1.0
  %v624 = vrcp.pop %v623
  %vm625 = vcmask 15360
  %626 = vst.msk [vmem:[%s15] sm:$0xff] %vm625, %v624
  // Predicated region
  $region62: #{tpu_custom_call.1} parent=0 // pred_check
    _
  $region63: #{tpu_custom_call.1} parent=0 // pred_check_branch
    %628 = sbr.rel (0) target = $region65
  $region64: #{tpu_custom_call.1} parent=0 // pred_region
    _
  $region65: #{tpu_custom_call.1} parent=0 // pred_fallthru
    _
  // Predicated region
  $region66: #{tpu_custom_call.1} parent=0 // pred_check
    _
  $region67: #{tpu_custom_call.1} parent=0 // pred_check_branch
    %630 = sbr.rel (0) target = $region69
  $region68: #{tpu_custom_call.1} parent=0 // pred_region
    _
  $region69: #{tpu_custom_call.1} parent=0 // pred_fallthru
    _

</llo_original>
